<compile_context>
chip_gen: v7x
topology: tpu7x:2x2x1
jax: 0.10.0
libtpu: 0.0.40
codegen_flags: <defaults>
</compile_context>

<pallas_src>
import jax
import jax.numpy as jnp
from jax import lax
from jax.experimental import pallas as pl
from jax.experimental.pallas import tpu as pltpu


def _round_up(x, m):
    return ((x + m - 1) // m) * m


def _pick_row_tile(n):
    # Large, sublane-aligned row tiles; keep >=2 row tiles when N allows so the
    # "parallel" grid axis can shard across both v7x TensorCores.
    for t in (512, 256, 128, 64, 32, 16, 8):
        if n >= 2 * t:
            return t
    return _round_up(max(n, 8), 8)


def ae_kernel(ids_ref, emb_ref, w_ref, enc_ref, dec_ref, gather_buf, z_bf16):
    # ids_ref   : (Np,)     int32  SMEM (scalar prefetch)
    # emb_ref   : (V, D)    f32    VMEM, grid-resident (constant index map)
    # w_ref     : (D, Vp)   bf16   VMEM, grid-resident (pre-transposed weight)
    # enc_ref   : (TN, D)   f32    VMEM output tile (resident across j)
    # dec_ref   : (TN, TV)  f32/bf16 VMEM output tile (lane-dense)
    # gather_buf: (TN, D)   f32    VMEM scratch (gathered embedding rows)
    # z_bf16    : (TN, D)   bf16   VMEM scratch (tanh(emb) for the MXU)
    i = pl.program_id(0)
    j = pl.program_id(1)
    tn = gather_buf.shape[0]
    tv = dec_ref.shape[1]

    @pl.when(j == 0)
    def _gather_and_encode():
        base = i * tn

        # In-VMEM gather: dynamic row slice of the resident embedding table.
        def body(r, carry):
            idx = ids_ref[base + r]
            gather_buf[pl.ds(r, 1), :] = emb_ref[pl.ds(idx, 1), :]
            return carry

        lax.fori_loop(0, tn, body, 0)

        z = jnp.tanh(gather_buf[...])           # f32 on VPU/EUP (v5e-friendly)
        enc_ref[...] = z
        z_bf16[...] = z.astype(jnp.bfloat16)    # bf16 copy for the MXU

    # Decode this vocab tile: z (TN, D) @ W^T slice (D, TV) -> (TN, TV).
    # Weight is already (D, Vp) and bf16, so no per-tile transpose/convert.
    col = pl.multiple_of(j * tv, 128)
    w_tile = w_ref[:, pl.ds(col, tv)]
    dec_ref[...] = jnp.dot(
        z_bf16[...], w_tile, preferred_element_type=jnp.float32
    ).astype(dec_ref.dtype)


def autoencoder_forward(x, emb, w_dec, *, logits_dtype=jnp.float32):
    """x: (B, S) int32 ids; emb: (V, D) f32; w_dec: (V, D) f32 (torch layout)."""
    B, S = x.shape
    V, D = emb.shape
    N = B * S

    out_itemsize = jnp.dtype(logits_dtype).itemsize

    TN = _pick_row_tile(N)
    if out_itemsize == 2:
        TN = _round_up(TN, 16)                  # bf16 sublane packing
    TV = min(512, _round_up(V, 128))            # lane-dense vocab tile
    Vp = _round_up(V, TV)

    # TODO(synk): if the embedding table itself exceeds the VMEM budget (huge
    # V*D), fall back to an HBM-resident table with a block-gather pipeline.
    def _vmem_est(tn, tv, vp):
        return (V * D * 4 * 2            # resident embedding table (+slack)
                + D * vp * 2 * 2         # resident bf16 decoder weight (+slack)
                + tn * tv * out_itemsize * 2   # double-buffered logits tile
                + tn * D * 4 * 2               # double-buffered enc tile
                + tn * D * 6)                  # f32 + bf16 scratch

    budget = 40 * (1 << 20)                     # keep headroom on v7x's 64 MiB
    while _vmem_est(TN, TV, Vp) > budget and TV > 128:
        TV //= 2
        Vp = _round_up(V, TV)
    while _vmem_est(TN, TV, Vp) > budget and TN > 8:
        TN //= 2

    Np = _round_up(N, TN)

    ids = x.reshape(N).astype(jnp.int32)
    if Np != N:
        ids = jnp.pad(ids, (0, Np - N))         # padded rows gather row 0, sliced off

    # One-off wrapper-side layout fix: (D, Vp) bf16, zero-padded vocab columns.
    w_t = w_dec.T.astype(jnp.bfloat16)
    if Vp != V:
        w_t = jnp.pad(w_t, ((0, 0), (0, Vp - V)))

    grid = (Np // TN, Vp // TV)
    vmem_limit = int(min(56 * (1 << 20),
                         max(32 * (1 << 20), int(_vmem_est(TN, TV, Vp) * 1.5))))

    enc, dec = pl.pallas_call(
        ae_kernel,
        out_shape=(
            jax.ShapeDtypeStruct((Np, D), jnp.float32),
            jax.ShapeDtypeStruct((Np, Vp), logits_dtype),
        ),
        grid_spec=pltpu.PrefetchScalarGridSpec(
            num_scalar_prefetch=1,
            grid=grid,
            in_specs=[
                # Embedding table: full block, constant index -> DMA'd once.
                pl.BlockSpec((V, D), lambda i, j, ids: (0, 0)),
                # Decoder weight (D, Vp) bf16: full block, constant index.
                pl.BlockSpec((D, Vp), lambda i, j, ids: (0, 0)),
            ],
            out_specs=(
                pl.BlockSpec((TN, D), lambda i, j, ids: (i, 0)),   # enc (resident over j)
                pl.BlockSpec((TN, TV), lambda i, j, ids: (i, j)),  # logits (lane-dense)
            ),
            scratch_shapes=[
                pltpu.VMEM((TN, D), jnp.float32),    # gathered embedding rows
                pltpu.VMEM((TN, D), jnp.bfloat16),   # tanh(emb) in bf16 for MXU
            ],
        ),
        compiler_params=pltpu.CompilerParams(
            dimension_semantics=("parallel", "arbitrary"),
            vmem_limit_bytes=vmem_limit),
    )(ids, emb, w_t)

    return enc[:N].reshape(B, S, D), dec[:N, :V].reshape(B, S, V)


if __name__ == "__main__":
    # Module config: in_bytes=8 -> vocab V=256, out_bytes=32 -> latent D=32.
    in_bytes = 8
    out_bytes = 32
    V = 1 << in_bytes
    D = out_bytes

    B, S = 2, 8  # small token batch

    key = jax.random.PRNGKey(0)
    k_ids, k_emb, k_dec = jax.random.split(key, 3)

    # Deterministic parameter init mimicking PyTorch defaults:
    #   nn.Embedding weight ~ N(0, 1); nn.Linear weight ~ U(-1/sqrt(D), 1/sqrt(D)).
    emb = jax.random.normal(k_emb, (V, D), dtype=jnp.float32)
    bound = 1.0 / (D ** 0.5)
    w_dec = jax.random.uniform(k_dec, (V, D), dtype=jnp.float32,
                               minval=-bound, maxval=bound)

    x = jax.random.randint(k_ids, (B, S), 0, V, dtype=jnp.int32)

    encoding, logits = autoencoder_forward(x, emb, w_dec)
    jax.block_until_ready((encoding, logits))

    # Pure-JAX reference check of the same forward pass.
    ref_enc = jnp.tanh(emb[x])                 # (B, S, D)
    ref_dec = ref_enc @ w_dec.T                # (B, S, V)
    assert encoding.shape == (B, S, D) and logits.shape == (B, S, V)
    assert jnp.allclose(encoding, ref_enc, atol=1e-5, rtol=1e-5)
    # Decoder matmul runs with bf16 MXU inputs (f32 accumulation) -> looser tol.
    assert jnp.allclose(logits, ref_dec, atol=2e-2, rtol=2e-2)

    print("KERNEL_OK")
</pallas_src>

<mosaic_0001>
module attributes {stable_mosaic.version = 11 : i64} {
  func.func @ae_kernel(%arg0: i32, %arg1: i32, %arg2: memref<16xi32, #tpu.memory_space<smem>>, %arg3: memref<256x32xf32, #tpu.memory_space<vmem>>, %arg4: memref<32x256xbf16, #tpu.memory_space<vmem>>, %arg5: memref<8x32xf32, #tpu.memory_space<vmem>>, %arg6: memref<8x256xf32, #tpu.memory_space<vmem>>, %arg7: memref<8x32xf32, #tpu.memory_space<vmem>>, %arg8: memref<8x32xbf16, #tpu.memory_space<vmem>>) attributes {dimension_semantics = [#tpu.dimension_semantics<parallel>, #tpu.dimension_semantics<arbitrary>], iteration_bounds = array<i64: 2, 1>, scalar_prefetch = 1 : i64, scratch_operands = 2 : i64, tpu.core_type = #tpu.core_type<tc>, window_params = [{pipeline_mode = #tpu.pipeline_mode<synchronous>, transform_indices = @transform_0, window_bounds = array<i64: 256, 32>}, {pipeline_mode = #tpu.pipeline_mode<synchronous>, transform_indices = @transform_1, window_bounds = array<i64: 32, 256>}, {transform_indices = @transform_2, window_bounds = array<i64: 8, 32>}, {transform_indices = @transform_3, window_bounds = array<i64: 8, 256>}]} {
    %c0_i32 = arith.constant 0 : i32
    %0 = arith.cmpi eq, %arg1, %c0_i32 : i32
    %1 = arith.extui %0 : i1 to i32
    %c0_i32_0 = arith.constant 0 : i32
    %2 = arith.cmpi ne, %1, %c0_i32_0 : i32
    scf.if %2 {
      %c8_i32 = arith.constant 8 : i32
      %10 = arith.muli %arg0, %c8_i32 : i32
      %c0_i32_5 = arith.constant 0 : i32
      %c8_i32_6 = arith.constant 8 : i32
      %11 = arith.addi %c0_i32_5, %c8_i32_6 : i32
      %c1_i32 = arith.constant 1 : i32
      scf.for %arg9 = %c0_i32_5 to %11 step %c1_i32  : i32 {
        %17 = arith.addi %10, %arg9 : i32
        %18 = arith.index_cast %17 : i32 to index
        %19 = memref.load %arg2[%18] : memref<16xi32, #tpu.memory_space<smem>>
        %20 = arith.index_cast %19 : i32 to index
        %c0_14 = arith.constant 0 : index
        %21 = vector.load %arg3[%20, %c0_14] : memref<256x32xf32, #tpu.memory_space<vmem>>, vector<1x32xf32>
        %22 = arith.index_cast %arg9 : i32 to index
        %c0_15 = arith.constant 0 : index
        %23 = vector.load %arg7[%22, %c0_15] : memref<8x32xf32, #tpu.memory_space<vmem>>, vector<1x32xf32>
        tpu.vector_store %arg7[%22, %c0_15], %21 {strides = array<i32>} : memref<8x32xf32, #tpu.memory_space<vmem>>, vector<1x32xf32>,
      }
      %c8_i32_7 = arith.constant 8 : i32
      %c0_8 = arith.constant 0 : index
      %c0_9 = arith.constant 0 : index
      %12 = vector.load %arg7[%c0_8, %c0_9] : memref<8x32xf32, #tpu.memory_space<vmem>>, vector<8x32xf32>
      %13 = math.tanh %12 : vector<8x32xf32>
      %c0_10 = arith.constant 0 : index
      %c0_11 = arith.constant 0 : index
      %14 = vector.load %arg5[%c0_10, %c0_11] : memref<8x32xf32, #tpu.memory_space<vmem>>, vector<8x32xf32>
      tpu.vector_store %arg5[%c0_10, %c0_11], %13 {strides = array<i32>} : memref<8x32xf32, #tpu.memory_space<vmem>>, vector<8x32xf32>,
      %15 = arith.truncf %13 : vector<8x32xf32> to vector<8x32xbf16>
      %c0_12 = arith.constant 0 : index
      %c0_13 = arith.constant 0 : index
      %16 = vector.load %arg8[%c0_12, %c0_13] : memref<8x32xbf16, #tpu.memory_space<vmem>>, vector<8x32xbf16>
      tpu.vector_store %arg8[%c0_12, %c0_13], %15 {strides = array<i32>} : memref<8x32xbf16, #tpu.memory_space<vmem>>, vector<8x32xbf16>,
    } else {
    }
    %c256_i32 = arith.constant 256 : i32
    %3 = arith.muli %arg1, %c256_i32 : i32
    %4 = tpu.assume_multiple %3, 128 : i32
    %c0 = arith.constant 0 : index
    %5 = arith.index_cast %4 : i32 to index
    %6 = vector.load %arg4[%c0, %5] : memref<32x256xbf16, #tpu.memory_space<vmem>>, vector<32x256xbf16>
    %c0_1 = arith.constant 0 : index
    %c0_2 = arith.constant 0 : index
    %7 = vector.load %arg8[%c0_1, %c0_2] : memref<8x32xbf16, #tpu.memory_space<vmem>>, vector<8x32xbf16>
    %cst = arith.constant dense<0.000000e+00> : vector<8x256xf32>
    %8 = tpu.matmul %7, %6, %cst {dimension_numbers = #tpu.dot_dimension_numbers<[1], [0], [0], [1], [0, 0, 1, 1], [], []>} : vector<8x32xbf16>, vector<32x256xbf16>, vector<8x256xf32> -> vector<8x256xf32>
    %c0_3 = arith.constant 0 : index
    %c0_4 = arith.constant 0 : index
    %9 = vector.load %arg6[%c0_3, %c0_4] : memref<8x256xf32, #tpu.memory_space<vmem>>, vector<8x256xf32>
    tpu.vector_store %arg6[%c0_3, %c0_4], %8 {strides = array<i32>} : memref<8x256xf32, #tpu.memory_space<vmem>>, vector<8x256xf32>,
    return
  }
  func.func @transform_0(%arg0: i32, %arg1: i32, %arg2: memref<16xi32, #tpu.memory_space<smem>>) -> (i32, i32) {
    %c0_i32 = arith.constant 0 : i32
    %c0_i32_0 = arith.constant 0 : i32
    %c0_i32_1 = arith.constant 0 : i32
    return %c0_i32, %c0_i32_0 : i32, i32
  }
  func.func @transform_1(%arg0: i32, %arg1: i32, %arg2: memref<16xi32, #tpu.memory_space<smem>>) -> (i32, i32) {
    %c0_i32 = arith.constant 0 : i32
    %c0_i32_0 = arith.constant 0 : i32
    %c0_i32_1 = arith.constant 0 : i32
    return %c0_i32, %c0_i32_0 : i32, i32
  }
  func.func @transform_2(%arg0: i32, %arg1: i32, %arg2: memref<16xi32, #tpu.memory_space<smem>>) -> (i32, i32) {
    %c0_i32 = arith.constant 0 : i32
    %c0_i32_0 = arith.constant 0 : i32
    return %arg0, %c0_i32 : i32, i32
  }
  func.func @transform_3(%arg0: i32, %arg1: i32, %arg2: memref<16xi32, #tpu.memory_space<smem>>) -> (i32, i32) {
    %c0_i32 = arith.constant 0 : i32
    return %arg0, %arg1 : i32, i32
  }
}

</mosaic_0001>

<llo_original>
// kernel: tpu_custom_call.1
$region0: #{tpu_custom_call.1}
  #allocation0 [shape = 'u32[]', space=smem, size = 0x4, offset = 0x4, fixed_abs, tag = 'smem constant byte address 0x4 - core index']
  #allocation1 [shape = 'u32[144,128]{1,0:T(1,128)}', space=vmem, size = 0x12000, scoped, tag = 'internal scratch']
  #allocation2 [shape = 'f32[8,32]{1,0:T(8,128)}', space=vmem, size = 0x1000, scoped, tag = 'scratch operand']
  #allocation3 [shape = 'bf16[8,32]{1,0:T(8,128)(2,1)}', space=vmem, size = 0x800, scoped, tag = 'scratch operand']
  #allocation4 [shape = 's32[1]{0}', space=sflag, size = 0x4, scoped, tag = 'scoped memory for tpu_custom_call.1']
  #allocation5 [shape = 'u8[512]{0}', space=smem, size = 0x200, scoped, tag = 'prefetched SMEM operand 0']
  %s0 = inlined_call_operand.vmem [shape: s32[16], index: 0, kind: input, shape index: {}]
  %s1 = inlined_call_operand.vmem [shape: f32[256,32], index: 1, kind: input, shape index: {}]
  %s2 = inlined_call_operand.vmem [shape: bf16[32,256], index: 2, kind: input, shape index: {}]
  %s3 = inlined_call_operand.hbm [shape: f32[16,32], index: 3, kind: output, shape index: {0}]
  %s4 = inlined_call_operand.hbm [shape: f32[16,256], index: 4, kind: output, shape index: {1}]
  %5 = xla_tuple %s3, %s4
  %s6 = sld [smem:[#allocation0]]
  $region60: #{tpu_custom_call.1} parent=0
    _
  %s8 = ssub.s32 1, %s6
  %s9 = scalar_select 0, %s8, %s6
  %s10 = sshll.u32 %s0, 4
  %s11 = int_to_ptr.vmem [resolvable:$true] %s10
  %13 = dma.vmem_to_smem %s11, 16, [#allocation5], [#allocation4]
  %14 = dma.done [#allocation4], 16
  %15 = sfence
  $region1: #{tpu_custom_call.1} parent=0
    #allocation6 [shape = 'u8[8192]{0}', space=vmem, size = 0x2000, scoped, tag = 'output window, operand 0']
    #allocation7 [shape = 's32[2]{0}', space=sflag, size = 0x8, scoped, tag = 'scoped memory for tpu_custom_call.1']
    #allocation8 [shape = 'u8[16384]{0}', space=vmem, size = 0x4000, scoped, tag = 'output window, operand 1']
    #allocation9 [shape = 's32[2]{0}', space=sflag, size = 0x8, scoped, tag = 'scoped memory for tpu_custom_call.1']
    %16 = vsyncpa [#allocation7], 0
    %s17 = scalar_lea.sflag [#allocation7], 1
    %18 = vsyncpa %s17, 0
    %19 = vsyncpa [#allocation9], 0
    %s20 = scalar_lea.sflag [#allocation9], 1
    %21 = vsyncpa %s20, 0
    loop: start=0, step=1, limit=4
    $region2: #{tpu_custom_call.1} parent=1 // loop_pre_header
      _
    $region3: #{tpu_custom_call.1} parent=1 // loop_header
      %s23 = sphi 0, %s27
      %p24 = scmp.ge.s32.totalorder %s23, 4
      %s30 = sphi 0, %s42
      %s31 = sphi 0, %s38
      %s32 = sphi 0, %s30
      %s33 = sphi 0, %s31
      %s34 = sphi 0, %s32
      %s35 = sphi 0, %s33
      %s43 = sphi 0, %s43
      %s45 = sphi 0, %s43
      %s46 = sphi 0, %s45
      %s60 = sphi 0, %s46
      %s64 = sphi 0, %s64
      %s66 = sphi 0, %s64
      %s67 = sphi 0, %s66
      %s81 = sphi 0, %s67
      %s87 = sphi 0, %s89
      %s90 = sphi 0, %s87
      %s91 = sphi 0, %s90
      %s107 = sphi 0, %s91
      %s115 = sphi 0, %s117
      %s118 = sphi 0, %s115
      %s119 = sphi 0, %s118
      %s135 = sphi 0, %s119
    $region4: #{tpu_custom_call.1} parent=1 // loop_header_branch
      %26 = sbr.rel (%p24) target = $region8
    $region5: #{tpu_custom_call.1} parent=1 // loop_body
      %s28 = ssub.s32 %s23, 1
      %s29 = ssub.s32 %s23, 2
      %s36 = sadd.s32 1, %s31
      %p37 = scmp.ge.s32.totalorder %s36, 1
      %s38 = scalar_select %p37, 0, %s36
      %s39 = sadd.s32 1, %s30
      %s40 = scalar_select %p37, %s39, %s30
      %p41 = scmp.ge.s32.totalorder %s40, 2
      %s42 = scalar_select %p41, 0, %s40
      %s44 = sadd.s32 %s43, 1
      %p47 = scmp.eq.s32.totalorder %s23, 1
      %p48 = scmp.ne.s32.totalorder %s43, %s45
      %p49 = scmp.eq.s32.totalorder %s23, 0
      %p50 = por %p48, %p49
      %p51 = scmp.ne.s32.totalorder %s43, %s45
      %p52 = scmp.eq.s32.totalorder %s28, 1
      %p53 = por %p51, %p52
      %p54 = scmp.ne.s32.totalorder %s45, %s46
      %p55 = scmp.eq.s32.totalorder %s28, 0
      %p56 = por %p54, %p55
      %p57 = scmp.ne.s32.totalorder %s45, %s46
      %p58 = scmp.eq.s32.totalorder %s29, 1
      %p59 = por %p57, %p58
      %p61 = scmp.ne.s32.totalorder %s46, %s60
      %p62 = scmp.eq.s32.totalorder %s29, 0
      %p63 = por %p61, %p62
      %s65 = sadd.s32 %s64, 1
      %p68 = scmp.eq.s32.totalorder %s23, 1
      %p69 = scmp.ne.s32.totalorder %s64, %s66
      %p70 = scmp.eq.s32.totalorder %s23, 0
      %p71 = por %p69, %p70
      %p72 = scmp.ne.s32.totalorder %s64, %s66
      %p73 = scmp.eq.s32.totalorder %s28, 1
      %p74 = por %p72, %p73
      %p75 = scmp.ne.s32.totalorder %s66, %s67
      %p76 = scmp.eq.s32.totalorder %s28, 0
      %p77 = por %p75, %p76
      %p78 = scmp.ne.s32.totalorder %s66, %s67
      %p79 = scmp.eq.s32.totalorder %s29, 1
      %p80 = por %p78, %p79
      %p82 = scmp.ne.s32.totalorder %s67, %s81
      %p83 = scmp.eq.s32.totalorder %s29, 0
      %p84 = por %p82, %p83
      %s85 = ssub.s32 %s30, %s42
      %p86 = scmp.eq.s32.totalorder %s85, 0
      %s88 = sadd.s32 %s87, 1
      %s89 = scalar_select %p86, %s87, %s88
      %p92 = pneg %p86
      %p93 = scmp.eq.s32.totalorder %s23, 1
      %p94 = por %p92, %p93
      %p95 = scmp.ne.s32.totalorder %s87, %s90
      %p96 = scmp.eq.s32.totalorder %s23, 0
      %p97 = por %p95, %p96
      %p98 = scmp.ne.s32.totalorder %s87, %s90
      %p99 = scmp.eq.s32.totalorder %s28, 1
      %p100 = por %p98, %p99
      %p101 = scmp.ne.s32.totalorder %s90, %s91
      %p102 = scmp.eq.s32.totalorder %s28, 0
      %p103 = por %p101, %p102
      %p104 = scmp.ne.s32.totalorder %s90, %s91
      %p105 = scmp.eq.s32.totalorder %s29, 1
      %p106 = por %p104, %p105
      %p108 = scmp.ne.s32.totalorder %s91, %s107
      %p109 = scmp.eq.s32.totalorder %s29, 0
      %p110 = por %p108, %p109
      %s111 = ssub.s32 %s30, %s42
      %s112 = ssub.s32 %s31, %s38
      %s113 = sor.u32 %s111, %s112
      %p114 = scmp.eq.s32.totalorder %s113, 0
      %s116 = sadd.s32 %s115, 1
      %s117 = scalar_select %p114, %s115, %s116
      %p120 = pneg %p114
      %p121 = scmp.eq.s32.totalorder %s23, 1
      %p122 = por %p120, %p121
      %p123 = scmp.ne.s32.totalorder %s115, %s118
      %p124 = scmp.eq.s32.totalorder %s23, 0
      %p125 = por %p123, %p124
      %p126 = scmp.ne.s32.totalorder %s115, %s118
      %p127 = scmp.eq.s32.totalorder %s28, 1
      %p128 = por %p126, %p127
      %p129 = scmp.ne.s32.totalorder %s118, %s119
      %p130 = scmp.eq.s32.totalorder %s28, 0
      %p131 = por %p129, %p130
      %p132 = scmp.ne.s32.totalorder %s118, %s119
      %p133 = scmp.eq.s32.totalorder %s29, 1
      %p134 = por %p132, %p133
      %p136 = scmp.ne.s32.totalorder %s119, %s135
      %p137 = scmp.eq.s32.totalorder %s29, 0
      %p138 = por %p136, %p137
      %p139 = scmp.le.s32.totalorder 1, %s23
      %p140 = scmp.lt.s32.totalorder %s23, 3
      %p141 = pnand %p139, %p140
      %p142 = pneg %p141
      // Predicated region
      $region9: #{tpu_custom_call.1} parent=5 // pred_check
        _
      $region10: #{tpu_custom_call.1} parent=5 // pred_check_branch
        %144 = sbr.rel (%p141) target = $region12
      $region11: #{tpu_custom_call.1} parent=5 // pred_region
        %s145 = ssub.s32 %s23, 1
        // Predicated region
        $region13: #{tpu_custom_call.1} parent=11 // pred_check
          %p146 = pneg %p56
        $region14: #{tpu_custom_call.1} parent=11 // pred_check_branch
          %148 = sbr.rel (%p146) target = $region16
        $region15: #{tpu_custom_call.1} parent=11 // pred_region
          _
        $region16: #{tpu_custom_call.1} parent=11 // pred_fallthru
          _
        // Predicated region
        $region17: #{tpu_custom_call.1} parent=11 // pred_check
          %p149 = pneg %p77
        $region18: #{tpu_custom_call.1} parent=11 // pred_check_branch
          %151 = sbr.rel (%p149) target = $region20
        $region19: #{tpu_custom_call.1} parent=11 // pred_region
          _
        $region20: #{tpu_custom_call.1} parent=11 // pred_fallthru
          _
      $region12: #{tpu_custom_call.1} parent=5 // pred_fallthru
        _
      %p152 = scmp.lt.s32.totalorder %s23, 2
      // Predicated region
      $region21: #{tpu_custom_call.1} parent=5 // pred_check
        %p153 = pneg %p152
      $region22: #{tpu_custom_call.1} parent=5 // pred_check_branch
        %155 = sbr.rel (%p153) target = $region24
      $region23: #{tpu_custom_call.1} parent=5 // pred_region
        _
      $region24: #{tpu_custom_call.1} parent=5 // pred_fallthru
        _
      %p156 = scmp.le.s32.totalorder 1, %s23
      %p157 = scmp.lt.s32.totalorder %s23, 3
      %p158 = pnand %p156, %p157
      %p159 = pneg %p158
      // Predicated region
      $region25: #{tpu_custom_call.1} parent=5 // pred_check
        _
      $region26: #{tpu_custom_call.1} parent=5 // pred_check_branch
        %161 = sbr.rel (%p158) target = $region28
      $region27: #{tpu_custom_call.1} parent=5 // pred_region
        %s162 = ssub.s32 %s23, 1
        %p163 = pneg %p56
        %p164 = pneg %p53
        %p165 = pneg %p77
        %p166 = pneg %p74
        %p167 = pneg %p103
        %p168 = pneg %p100
        %s169 = sand.u32 %s90, 1
        %s170 = scalar_lea.sflag [#allocation7], %s169
        %s171 = sand.u32 %s90, 1
        %s172 = smul.addr %s171, 8
        %s173 = scalar_lea.vmem [#allocation6], %s172
        %p174 = pneg %p131
        %p175 = pneg %p128
        %s176 = sand.u32 %s118, 1
        %s177 = scalar_lea.sflag [#allocation9], %s176
        %s178 = sand.u32 %s118, 1
        %s179 = smul.addr %s178, 16
        %s180 = scalar_lea.vmem [#allocation8], %s179
        %s181 = smul.u32 2, %s33
        %p183 = scmp.eq.s32.totalorder %s33, 0
        // Predicated region
        $region29: #{tpu_custom_call.1} parent=27 // pred_check
          %p184 = pneg %p183
        $region30: #{tpu_custom_call.1} parent=27 // pred_check_branch
          %186 = sbr.rel (%p184) target = $region32
        $region31: #{tpu_custom_call.1} parent=27 // pred_region
          %s187 = smul.u32 %s32, 8
          loop: start=0, step=1, limit=8
          $region33: #{tpu_custom_call.1} parent=31 // loop_pre_header
            _
          $region34: #{tpu_custom_call.1} parent=31 // loop_header
            %s189 = sphi 0, %s193
            %p190 = scmp.ge.s32.totalorder %s189, 8
          $region35: #{tpu_custom_call.1} parent=31 // loop_header_branch
            %192 = sbr.rel (%p190) target = $region39
          $region36: #{tpu_custom_call.1} parent=31 // loop_body
            %s194 = sadd.s32 %s187, %s189
            %s195 = sld [smem:[#allocation5 + %s194]]
            %s196 = scalar_lea.vmem %s1, %s195
            %v197 = vld [vmem:[%s196] sm:$0x1]
            %s198 = scalar_lea.vmem [#allocation2], %s189
            %vm199 = vcmask 253952
            %200 = vst.msk [vmem:[%s198] sm:$0x1] %vm199, %v197
          $region37: #{tpu_custom_call.1} parent=31 // loop_footer
            %s193 = sadd.s32 1, %s189
          $region38: #{tpu_custom_call.1} parent=31 // loop_footer_branch
            %188 = sbr.rel target = $region34
          $region39: #{tpu_custom_call.1} parent=31 // loop_exit
            _
          %v201 = vld [vmem:[#allocation2] sm:$0xff]
          %v202 = vtanh.pop %v201
          %vm203 = vcmask 261120
          %204 = vst.msk [vmem:[%s173] sm:$0xff] %vm203, %v202
          %v205 = vpack.c.bf16 %v202, %v202
          %vm206 = vcmask 257024
          %207 = vst.msk [vmem:[#allocation3] sm:$0xf] %vm206, %v205
        $region32: #{tpu_custom_call.1} parent=27 // pred_fallthru
          _
        %s208 = smul.u32 %s33, 256
        %s209 = sshra.s32 %s208, 7
        %s210 = sand.u32 %s208, 127
        %s211 = smul.addr %s209, 4
        %s212 = scalar_lea.vmem %s2, %s211
        %v213 = vld [vmem:[%s212] sm:$0xff]
        %v214 = vld [vmem:[%s212 + $0x8] sm:$0xff]
        %v215 = vld [vmem:[%s212 + $0x10] sm:$0xff]
        %v216 = vld [vmem:[%s212 + $0x18] sm:$0xff]
        %v217 = vld [vmem:[#allocation3] sm:$0xf]
        %v222 = vunpack.c.l.b16 %v213
        %v223 = vunpack.c.h.b16 %v213
        %v224 = vunpack.c.l.b16 %v214
        %v225 = vunpack.c.h.b16 %v214
        %v226 = vunpack.c.l.b16 %v215
        %v227 = vunpack.c.h.b16 %v215
        %v228 = vunpack.c.l.b16 %v216
        %v229 = vunpack.c.h.b16 %v216
        %v230 = vpack.c.b16 %v224, %v222
        %v231 = vpack.c.b16 %v225, %v223
        %v232 = vpack.c.b16 %v228, %v226
        %v233 = vpack.c.b16 %v229, %v227
        %vm238 = vcmask 261120
        %v240 = vsel %vm238, %v217, 0
        %242 = vmatprep.subr.bf16.mxu0 %v231
        %243 = vmatpush1.bf16.msra.mxu0 %v230
        %244 = vmatprep.subr.bf16.mxu0 %v233
        %245 = vmatpush1.bf16.msra.mxu0 %v232
        %246 = vmatprep.subr.bf16.mxu0 0
        %247 = vmatpush1.bf16.msra.mxu0 0
        %248 = vmatprep.subr.bf16.mxu0 0
        %249 = vmatpush1.bf16.msra.mxu0 0
        %250 = vmatprep.subr.bf16.mxu0 0
        %251 = vmatpush1.bf16.msra.mxu0 0
        %252 = vmatprep.subr.bf16.mxu0 0
        %253 = vmatpush1.bf16.msra.mxu0 0
        %254 = vmatprep.subr.bf16.mxu0 0
        %255 = vmatpush1.bf16.msra.mxu0 0
        %256 = vmatprep.subr.bf16.mxu0 0
        %257 = vmatpush1.bf16.msra.mxu0 0
        %258 = vmatprep.subr.bf16.mxu0 0
        %259 = vmatpush1.bf16.msra.mxu0 0
        %260 = vmatprep.subr.bf16.mxu0 0
        %261 = vmatpush1.bf16.msra.mxu0 0
        %262 = vmatprep.subr.bf16.mxu0 0
        %263 = vmatpush1.bf16.msra.mxu0 0
        %264 = vmatprep.subr.bf16.mxu0 0
        %265 = vmatpush1.bf16.msra.mxu0 0
        %266 = vmatprep.subr.bf16.mxu0 0
        %267 = vmatpush1.bf16.msra.mxu0 0
        %268 = vmatprep.subr.bf16.mxu0 0
        %269 = vmatpush1.bf16.msra.mxu0 0
        %270 = vmatprep.subr.bf16.mxu0 0
        %271 = vmatpush1.bf16.msra.mxu0 0
        %272 = vmatprep.subr.bf16.mxu0 0
        %273 = vmatpush1.bf16.msra.mxu0 0
        %274 = vmatprep.mubr.bf16.mxu0 0
        %275 = vmatmul.mubr.bf16.gmra.mrb[0].mxu0 %v240
        %v276 = vpop.f32.mrb[0].mxu0
        %v277 = vadd.f32 0.0, %v276
        %v278 = vpop.f32.mrb[0].mxu0
        %v279 = vadd.f32 0.0, %v278
        %v280 = vpop.f32.mrb[0].mxu0
        %v281 = vpop.f32.mrb[0].mxu0
        %282 = vdwg.mxu0
        %283 = vst [vmem:[%s180] sm:$0xff] %v277
        %284 = vst [vmem:[%s180 + $0x8] sm:$0xff] %v279
        %s285 = sand.u32 %s90, 1
        %s286 = scalar_lea.sflag [#allocation7], %s285
        %s287 = sand.u32 %s90, 1
        %s288 = smul.addr %s287, 8
        %s289 = scalar_lea.vmem [#allocation6], %s288
        %s290 = sand.u32 %s118, 1
        %s291 = scalar_lea.sflag [#allocation9], %s290
        %s292 = sand.u32 %s118, 1
        %s293 = smul.addr %s292, 16
        %s294 = scalar_lea.vmem [#allocation8], %s293
        // Predicated region
        $region40: #{tpu_custom_call.1} parent=27 // pred_check
          %p295 = pneg %p100
        $region41: #{tpu_custom_call.1} parent=27 // pred_check_branch
          %297 = sbr.rel (%p295) target = $region43
        $region42: #{tpu_custom_call.1} parent=27 // pred_region
          %s299 = ssub.s32 128, 128
          %300 = vsyncadd %s286, %s299
          %s301 = smul.addr %s32, 128
          %s302 = scalar_lea.hbm %s3, %s301
          %s304 = sshll.u32 %s289, 4
          %s305 = int_to_ptr.vmem [resolvable:$true] %s304
          %307 = dma.vmem_to_hbm [thread:$0]  %s305, 128, %s302, %s286
        $region43: #{tpu_custom_call.1} parent=27 // pred_fallthru
          _
        // Predicated region
        $region44: #{tpu_custom_call.1} parent=27 // pred_check
          %p308 = pneg %p128
        $region45: #{tpu_custom_call.1} parent=27 // pred_check_branch
          %310 = sbr.rel (%p308) target = $region47
        $region46: #{tpu_custom_call.1} parent=27 // pred_region
          %s311 = smul.u32 2, %s33
          %s313 = ssub.s32 256, 256
          %314 = vsyncadd %s291, %s313
          %s315 = smul.addr %s32, 2
          %s316 = sadd.s32 %s311, %s315
          %s317 = smul.addr %s316, 128
          %s318 = scalar_lea.hbm %s4, %s317
          %s320 = sshll.u32 %s294, 4
          %s321 = int_to_ptr.vmem [resolvable:$true] %s320
          %323 = dma.vmem_to_hbm [thread:$0]  %s321, 256, %s318, %s291
        $region47: #{tpu_custom_call.1} parent=27 // pred_fallthru
          _
      $region28: #{tpu_custom_call.1} parent=5 // pred_fallthru
        _
      %p324 = scmp.le.s32.totalorder 2, %s23
      // Predicated region
      $region48: #{tpu_custom_call.1} parent=5 // pred_check
        %p325 = pneg %p324
      $region49: #{tpu_custom_call.1} parent=5 // pred_check_branch
        %327 = sbr.rel (%p325) target = $region51
      $region50: #{tpu_custom_call.1} parent=5 // pred_region
        %s328 = ssub.s32 %s23, 2
        // Predicated region
        $region52: #{tpu_custom_call.1} parent=50 // pred_check
          %p329 = pneg %p106
        $region53: #{tpu_custom_call.1} parent=50 // pred_check_branch
          %331 = sbr.rel (%p329) target = $region55
        $region54: #{tpu_custom_call.1} parent=50 // pred_region
          %s332 = sand.u32 %s91, 1
          %s333 = scalar_lea.sflag [#allocation7], %s332
          %s334 = sand.u32 %s91, 1
          %s335 = smul.addr %s334, 8
          %s336 = scalar_lea.vmem [#allocation6], %s335
          %337 = dma.done %s333, 128
        $region55: #{tpu_custom_call.1} parent=50 // pred_fallthru
          _
        // Predicated region
        $region56: #{tpu_custom_call.1} parent=50 // pred_check
          %p338 = pneg %p134
        $region57: #{tpu_custom_call.1} parent=50 // pred_check_branch
          %340 = sbr.rel (%p338) target = $region59
        $region58: #{tpu_custom_call.1} parent=50 // pred_region
          %s341 = sand.u32 %s119, 1
          %s342 = scalar_lea.sflag [#allocation9], %s341
          %s343 = sand.u32 %s119, 1
          %s344 = smul.addr %s343, 16
          %s345 = scalar_lea.vmem [#allocation8], %s344
          %346 = dma.done %s342, 256
        $region59: #{tpu_custom_call.1} parent=50 // pred_fallthru
          _
      $region51: #{tpu_custom_call.1} parent=5 // pred_fallthru
        _
    $region6: #{tpu_custom_call.1} parent=1 // loop_footer
      %s27 = sadd.s32 1, %s23
    $region7: #{tpu_custom_call.1} parent=1 // loop_footer_branch
      %22 = sbr.rel target = $region3
    $region8: #{tpu_custom_call.1} parent=1 // loop_exit
      _
    %347 = vsyncpa [#allocation7], 1
    %s348 = scalar_lea.sflag [#allocation7], 1
    %349 = vsyncpa %s348, 1
    %350 = vsyncpa [#allocation9], 1
    %s351 = scalar_lea.sflag [#allocation9], 1
    %352 = vsyncpa %s351, 1

</llo_original>
